<compile_context>
chip_gen: v6e
topology: v6e:2x2x1
jax: 0.10.0
libtpu: 0.0.40
codegen_flags: <defaults>
</compile_context>

<pallas_src>
import jax
import jax.numpy as jnp
from jax.experimental import pallas as pl
from jax.experimental.pallas import tpu as pltpu


def _maxpool2x2_kernel(x_ref, sel_ref, o_ref):
    # x_ref:   (TP, 2*W)   -- each row = [input row 2r | input row 2r+1]
    # sel_ref: (W-1, Wo)   -- sel[i, j] = 1.0 iff i == 2*j (column selector)
    # o_ref:   (TP, Wo)
    two_w = x_ref.shape[-1]
    w = two_w // 2
    v = x_ref[...]
    # Reduce the h-pair: the two contiguous halves of each row (VALU max).
    hmax = jnp.maximum(v[:, :w], v[:, w:])                    # (TP, W)
    # Pairwise max of adjacent columns: pm[:, i] = max(hmax[:, i], hmax[:, i+1]).
    pm = jnp.maximum(hmax[:, :-1], hmax[:, 1:])               # (TP, W-1)
    # Compact the even columns (the 2x2-window maxes) with an exact 0/1
    # selection matmul on the MXU (free slot in this mem-bound kernel).
    out = jnp.dot(pm, sel_ref[...], preferred_element_type=jnp.float32)
    o_ref[...] = out.astype(o_ref.dtype)


def _choose_row_tile(num_rows, bytes_per_row,
                     budget_bytes=2 * 1024 * 1024, cap=2048):
    # ~2 MiB input blocks: big enough to hit the HBM roofline, small enough
    # that double-buffered in/out blocks stay far below every generation's
    # default scoped-VMEM limit (v5e 16 MiB, v6e/v7x 32 MiB).
    tp = max(1, budget_bytes // max(1, bytes_per_row))
    tp = int(min(num_rows, tp, cap))
    if tp >= 8:
        tp -= tp % 8          # keep the sublane dimension aligned
    return tp


@jax.jit
def maxpool2x2(x_nchw):
    """2x2, stride-2 max pooling on NCHW input (== nn.MaxPool2d(2))."""
    n, c, h, w = x_nchw.shape
    ho, wo = h // 2, w // 2
    if h % 2 or w % 2:        # PyTorch floors the output size: drop the odd edge.
        x_nchw = x_nchw[:, :, : 2 * ho, : 2 * wo]

    wc = 2 * wo               # (cropped) input width
    p = n * c * ho            # one kernel row per output row
    x_rows = x_nchw.reshape(p, 2 * wc)   # free reshape in NCHW

    # Exact 0/1 column-selection matrix: output column j picks pm column 2j.
    rows = jnp.arange(wc - 1)[:, None]
    cols = jnp.arange(wo)[None, :]
    sel = (rows == 2 * cols).astype(x_rows.dtype)      # (W-1, Wo)

    esize = x_rows.dtype.itemsize
    tp = _choose_row_tile(p, 2 * wc * esize)
    grid = (pl.cdiv(p, tp),)

    cost = pl.CostEstimate(
        flops=int(2 * p * (wc - 1) * wo + 2 * p * wc),
        transcendentals=0,
        bytes_accessed=int((p * 2 * wc + p * wo) * esize),
    )

    out = pl.pallas_call(
        _maxpool2x2_kernel,
        out_shape=jax.ShapeDtypeStruct((p, wo), x_rows.dtype),
        grid=grid,
        in_specs=[
            pl.BlockSpec((tp, 2 * wc), lambda i: (i, 0)),
            pl.BlockSpec((wc - 1, wo), lambda i: (0, 0)),   # resident constant
        ],
        out_specs=pl.BlockSpec((tp, wo), lambda i: (i, 0)),
        compiler_params=pltpu.CompilerParams(
            dimension_semantics=("parallel",),   # rows independent -> both TCs on v7x
        ),
        cost_estimate=cost,
    )(x_rows, sel)

    # Free reshape back to NCHW output.
    return out.reshape(n, c, ho, wo)


class DownPallas:
    """JAX/Pallas equivalent of the PyTorch `down` module (MaxPool2d(2))."""

    def __init__(self, in_dim):
        # nn.MaxPool2d(2) has no parameters; in_dim kept only for interface parity.
        self.in_dim = in_dim

    def __call__(self, x_nchw):
        return maxpool2x2(x_nchw)


def _reference(x_nchw):
    n, c, h, w = x_nchw.shape
    ho, wo = h // 2, w // 2
    xc = x_nchw[:, :, : 2 * ho, : 2 * wo]
    return xc.reshape(n, c, ho, 2, wo, 2).max(axis=(3, 5))


if __name__ == "__main__":
    key = jax.random.PRNGKey(0)
    k1, k2 = jax.random.split(key)

    # Primary small test (shapes implied by the module interface).
    n, c, h, w = 2, 4, 16, 16
    x = jax.random.normal(k1, (n, c, h, w), jnp.float32)

    module = DownPallas(in_dim=c)
    y = jax.block_until_ready(module(x))
    assert y.shape == (n, c, h // 2, w // 2), y.shape
    assert jnp.allclose(y, _reference(x)), "maxpool mismatch (small shape)"

    # Secondary check at a larger shape: exercises a multi-step grid and the
    # pipelined DMA path (p = 8192 rows, 4 grid steps).
    n2, c2, h2, w2 = 2, 128, 64, 64
    x2 = jax.random.normal(k2, (n2, c2, h2, w2), jnp.float32)
    y2 = jax.block_until_ready(maxpool2x2(x2))
    assert y2.shape == (n2, c2, h2 // 2, w2 // 2), y2.shape
    assert jnp.allclose(y2, _reference(x2)), "maxpool mismatch (large shape)"

    print("KERNEL_OK")
</pallas_src>

<mosaic_0001>
module attributes {stable_mosaic.version = 11 : i64} {
  func.func @_maxpool2x2_kernel(%arg0: i32, %arg1: memref<64x32xf32, #tpu.memory_space<vmem>>, %arg2: memref<15x8xf32, #tpu.memory_space<vmem>>, %arg3: memref<64x8xf32, #tpu.memory_space<vmem>>) attributes {dimension_semantics = [#tpu.dimension_semantics<parallel>], iteration_bounds = array<i64: 1>, scalar_prefetch = 0 : i64, scratch_operands = 0 : i64, tpu.core_type = #tpu.core_type<tc>, window_params = [{transform_indices = @transform_0, window_bounds = array<i64: 64, 32>}, {pipeline_mode = #tpu.pipeline_mode<synchronous>, transform_indices = @transform_1, window_bounds = array<i64: 15, 8>}, {transform_indices = @transform_2, window_bounds = array<i64: 64, 8>}]} {
    %c0 = arith.constant 0 : index
    %c0_0 = arith.constant 0 : index
    %0 = vector.load %arg1[%c0, %c0_0] : memref<64x32xf32, #tpu.memory_space<vmem>>, vector<64x32xf32>
    %1 = vector.extract_strided_slice %0 {offsets = [0, 0], sizes = [64, 16], strides = [1, 1]} : vector<64x32xf32> to vector<64x16xf32>
    %2 = vector.extract_strided_slice %0 {offsets = [0, 16], sizes = [64, 16], strides = [1, 1]} : vector<64x32xf32> to vector<64x16xf32>
    %3 = arith.maximumf %1, %2 : vector<64x16xf32>
    %4 = vector.extract_strided_slice %3 {offsets = [0, 0], sizes = [64, 15], strides = [1, 1]} : vector<64x16xf32> to vector<64x15xf32>
    %5 = vector.extract_strided_slice %3 {offsets = [0, 1], sizes = [64, 15], strides = [1, 1]} : vector<64x16xf32> to vector<64x15xf32>
    %6 = arith.maximumf %4, %5 : vector<64x15xf32>
    %c0_1 = arith.constant 0 : index
    %c0_2 = arith.constant 0 : index
    %7 = vector.load %arg2[%c0_1, %c0_2] : memref<15x8xf32, #tpu.memory_space<vmem>>, vector<15x8xf32>
    %cst = arith.constant dense<0.000000e+00> : vector<64x8xf32>
    %8 = tpu.matmul %6, %7, %cst {dimension_numbers = #tpu.dot_dimension_numbers<[1], [0], [0], [1], [0, 0, 1, 1], [], []>} : vector<64x15xf32>, vector<15x8xf32>, vector<64x8xf32> -> vector<64x8xf32>
    %c0_3 = arith.constant 0 : index
    %c0_4 = arith.constant 0 : index
    %9 = vector.load %arg3[%c0_3, %c0_4] : memref<64x8xf32, #tpu.memory_space<vmem>>, vector<64x8xf32>
    tpu.vector_store %arg3[%c0_3, %c0_4], %8 {strides = array<i32>} : memref<64x8xf32, #tpu.memory_space<vmem>>, vector<64x8xf32>,
    return
  }
  func.func @transform_0(%arg0: i32) -> (i32, i32) {
    %c0_i32 = arith.constant 0 : i32
    %c0_i32_0 = arith.constant 0 : i32
    return %arg0, %c0_i32 : i32, i32
  }
  func.func @transform_1(%arg0: i32) -> (i32, i32) {
    %c0_i32 = arith.constant 0 : i32
    %c0_i32_0 = arith.constant 0 : i32
    %c0_i32_1 = arith.constant 0 : i32
    return %c0_i32, %c0_i32_0 : i32, i32
  }
  func.func @transform_2(%arg0: i32) -> (i32, i32) {
    %c0_i32 = arith.constant 0 : i32
    %c0_i32_0 = arith.constant 0 : i32
    return %arg0, %c0_i32 : i32, i32
  }
}

</mosaic_0001>

<llo_original>
// kernel: maxpool2x2.1
$region0: #{maxpool2x2.1}
  #allocation0 [shape = 'u32[]', space=smem, size = 0x4, offset = 0x4, fixed_abs, tag = 'smem constant byte address 0x4 - core index']
  #allocation1 [shape = 'u32[144,128]{1,0:T(1,128)}', space=vmem, size = 0x12000, scoped, tag = 'internal scratch']
  %s0 = inlined_call_operand.vmem [shape: f32[64,32], index: 0, kind: input, shape index: {}]
  %s1 = inlined_call_operand.vmem [shape: f32[15,8], index: 1, kind: input, shape index: {}]
  %s2 = inlined_call_operand.hbm [shape: f32[64,8], index: 2, kind: output, shape index: {}]
  %s3 = sld [smem:[#allocation0]]
  $region18: #{maxpool2x2.1} parent=0
    _
  %s5 = ssub.s32 1, %s3
  %s6 = scalar_select 0, %s5, %s3
  $region1: #{maxpool2x2.1} parent=0
    #allocation2 [shape = 'u8[32768]{0}', space=vmem, size = 0x8000, scoped, tag = 'output window, operand 0, single buffered']
    #allocation3 [shape = 's32[1]{0}', space=sflag, size = 0x4, scoped, tag = 'scoped memory for maxpool2x2.1']
    %7 = vsyncpa [#allocation3], 0
    // Predicated region
    $region2: #{maxpool2x2.1} parent=1 // pred_check
      _
    $region3: #{maxpool2x2.1} parent=1 // pred_check_branch
      %9 = sbr.rel (0) target = $region5
    $region4: #{maxpool2x2.1} parent=1 // pred_region
      _
    $region5: #{maxpool2x2.1} parent=1 // pred_fallthru
      _
    // Predicated region
    $region6: #{maxpool2x2.1} parent=1 // pred_check
      _
    $region7: #{maxpool2x2.1} parent=1 // pred_check_branch
      %11 = sbr.rel (0) target = $region9
    $region8: #{maxpool2x2.1} parent=1 // pred_region
      _
    $region9: #{maxpool2x2.1} parent=1 // pred_fallthru
      _
    %v12 = vld [vmem:[%s0] sm:$0xff]
    %v13 = vld [vmem:[%s0 + $0x8] sm:$0xff]
    %v14 = vld [vmem:[%s0 + $0x10] sm:$0xff]
    %v15 = vld [vmem:[%s0 + $0x18] sm:$0xff]
    %v16 = vld [vmem:[%s0 + $0x20] sm:$0xff]
    %v17 = vld [vmem:[%s0 + $0x28] sm:$0xff]
    %v18 = vld [vmem:[%s0 + $0x30] sm:$0xff]
    %v19 = vld [vmem:[%s0 + $0x38] sm:$0xff]
    %28 = vrot.lane.b32.xlu0 %v12, 112
    %v29 = vpop.permute.xlu0 %28
    %30 = vrot.lane.b32.xlu0 %v13, 112
    %v31 = vpop.permute.xlu0 %30
    %32 = vrot.lane.b32.xlu0 %v14, 112
    %v33 = vpop.permute.xlu0 %32
    %34 = vrot.lane.b32.xlu0 %v15, 112
    %v35 = vpop.permute.xlu0 %34
    %36 = vrot.lane.b32.xlu0 %v16, 112
    %v37 = vpop.permute.xlu0 %36
    %38 = vrot.lane.b32.xlu0 %v17, 112
    %v39 = vpop.permute.xlu0 %38
    %40 = vrot.lane.b32.xlu0 %v18, 112
    %v41 = vpop.permute.xlu0 %40
    %42 = vrot.lane.b32.xlu0 %v19, 112
    %v43 = vpop.permute.xlu0 %42
    %v52 = vmax.f32 %v12, %v29
    %v53 = vmax.f32 %v13, %v31
    %v54 = vmax.f32 %v14, %v33
    %v55 = vmax.f32 %v15, %v35
    %v56 = vmax.f32 %v16, %v37
    %v57 = vmax.f32 %v17, %v39
    %v58 = vmax.f32 %v18, %v41
    %v59 = vmax.f32 %v19, %v43
    %68 = vrot.lane.b32.xlu0 %v52, 127
    %v69 = vpop.permute.xlu0 %68
    %70 = vrot.lane.b32.xlu0 %v53, 127
    %v71 = vpop.permute.xlu0 %70
    %72 = vrot.lane.b32.xlu0 %v54, 127
    %v73 = vpop.permute.xlu0 %72
    %74 = vrot.lane.b32.xlu0 %v55, 127
    %v75 = vpop.permute.xlu0 %74
    %76 = vrot.lane.b32.xlu0 %v56, 127
    %v77 = vpop.permute.xlu0 %76
    %78 = vrot.lane.b32.xlu0 %v57, 127
    %v79 = vpop.permute.xlu0 %78
    %80 = vrot.lane.b32.xlu0 %v58, 127
    %v81 = vpop.permute.xlu0 %80
    %82 = vrot.lane.b32.xlu0 %v59, 127
    %v83 = vpop.permute.xlu0 %82
    %v92 = vmax.f32 %v52, %v69
    %v93 = vmax.f32 %v53, %v71
    %v94 = vmax.f32 %v54, %v73
    %v95 = vmax.f32 %v55, %v75
    %v96 = vmax.f32 %v56, %v77
    %v97 = vmax.f32 %v57, %v79
    %v98 = vmax.f32 %v58, %v81
    %v99 = vmax.f32 %v59, %v83
    %v100 = vld [vmem:[%s1] sm:$0xff]
    %v101 = vld [vmem:[%s1 + $0x8] sm:$0x7f]
    %vm102 = vcmask 121856
    %v104 = vsel %vm102, %v92, 0
    %v107 = vsel %vm102, %v93, 0
    %v110 = vsel %vm102, %v94, 0
    %v113 = vsel %vm102, %v95, 0
    %v116 = vsel %vm102, %v96, 0
    %v119 = vsel %vm102, %v97, 0
    %v122 = vsel %vm102, %v98, 0
    %v125 = vsel %vm102, %v99, 0
    %vm127 = vcmask 1046528
    %v129 = vsel %vm127, %v101, 0
    %131 = vmatprep.subr.mxu0 0.0
    %132 = vmatpush1.msra.mxu0 0.0
    %133 = vmatprep.subr.mxu0 0.0
    %134 = vmatpush1.msra.mxu0 0.0
    %135 = vmatprep.subr.mxu0 0.0
    %136 = vmatpush1.msra.mxu0 0.0
    %137 = vmatprep.subr.mxu0 0.0
    %138 = vmatpush1.msra.mxu0 0.0
    %139 = vmatprep.subr.mxu0 0.0
    %140 = vmatpush1.msra.mxu0 0.0
    %141 = vmatprep.subr.mxu0 0.0
    %142 = vmatpush1.msra.mxu0 0.0
    %143 = vmatprep.subr.mxu0 0.0
    %144 = vmatpush1.msra.mxu0 0.0
    %145 = vmatprep.subr.mxu0 0.0
    %146 = vmatpush1.msra.mxu0 0.0
    %147 = vmatprep.subr.mxu0 0.0
    %148 = vmatpush1.msra.mxu0 0.0
    %149 = vmatprep.subr.mxu0 0.0
    %150 = vmatpush1.msra.mxu0 0.0
    %151 = vmatprep.subr.mxu0 0.0
    %152 = vmatpush1.msra.mxu0 0.0
    %153 = vmatprep.subr.mxu0 0.0
    %154 = vmatpush1.msra.mxu0 0.0
    %155 = vmatprep.subr.mxu0 0.0
    %156 = vmatpush1.msra.mxu0 0.0
    %157 = vmatprep.subr.mxu0 0.0
    %158 = vmatpush1.msra.mxu0 0.0
    %159 = vmatprep.subr.mxu0 0.0
    %160 = vmatpush1.msra.mxu0 %v129
    %161 = vmatprep.subr.mxu0 0.0
    %162 = vmatpush1.msra.mxu0 %v100
    %163 = vmatprep.subr.mxu0 0.0
    %164 = vmatpush2.msra.mxu0 0.0
    %165 = vmatprep.subr.mxu0 0.0
    %166 = vmatpush2.msra.mxu0 0.0
    %167 = vmatprep.subr.mxu0 0.0
    %168 = vmatpush2.msra.mxu0 0.0
    %169 = vmatprep.subr.mxu0 0.0
    %170 = vmatpush2.msra.mxu0 0.0
    %171 = vmatprep.subr.mxu0 0.0
    %172 = vmatpush2.msra.mxu0 0.0
    %173 = vmatprep.subr.mxu0 0.0
    %174 = vmatpush2.msra.mxu0 0.0
    %175 = vmatprep.subr.mxu0 0.0
    %176 = vmatpush2.msra.mxu0 0.0
    %177 = vmatprep.subr.mxu0 0.0
    %178 = vmatpush2.msra.mxu0 0.0
    %179 = vmatprep.subr.mxu0 0.0
    %180 = vmatpush2.msra.mxu0 0.0
    %181 = vmatprep.subr.mxu0 0.0
    %182 = vmatpush2.msra.mxu0 0.0
    %183 = vmatprep.subr.mxu0 0.0
    %184 = vmatpush2.msra.mxu0 0.0
    %185 = vmatprep.subr.mxu0 0.0
    %186 = vmatpush2.msra.mxu0 0.0
    %187 = vmatprep.subr.mxu0 0.0
    %188 = vmatpush2.msra.mxu0 0.0
    %189 = vmatprep.subr.mxu0 0.0
    %190 = vmatpush2.msra.mxu0 0.0
    %191 = vmatprep.subr.mxu0 0.0
    %192 = vmatpush2.msra.mxu0 0.0
    %193 = vmatprep.subr.mxu0 0.0
    %194 = vmatpush2.msra.mxu0 0.0
    %195 = vmatprep.mubr.f32.mxu0 0.0
    %196 = vmatmul.mubr.f32.gmra.mxu0 %v104
    %v197 = vpop.f32.mrf.mxu0
    %v198 = vadd.f32 0.0, %v197
    %v199 = vpop.f32.mrf.mxu0
    %200 = vmatprep.mubr.f32.mxu0 0.0
    %201 = vmatmul.mubr.f32.gmra.mxu0 %v107
    %v202 = vpop.f32.mrf.mxu0
    %v203 = vadd.f32 0.0, %v202
    %v204 = vpop.f32.mrf.mxu0
    %205 = vmatprep.mubr.f32.mxu0 0.0
    %206 = vmatmul.mubr.f32.gmra.mxu0 %v110
    %v207 = vpop.f32.mrf.mxu0
    %v208 = vadd.f32 0.0, %v207
    %v209 = vpop.f32.mrf.mxu0
    %210 = vmatprep.mubr.f32.mxu0 0.0
    %211 = vmatmul.mubr.f32.gmra.mxu0 %v113
    %v212 = vpop.f32.mrf.mxu0
    %v213 = vadd.f32 0.0, %v212
    %v214 = vpop.f32.mrf.mxu0
    %215 = vmatprep.mubr.f32.mxu0 0.0
    %216 = vmatmul.mubr.f32.gmra.mxu0 %v116
    %v217 = vpop.f32.mrf.mxu0
    %v218 = vadd.f32 0.0, %v217
    %v219 = vpop.f32.mrf.mxu0
    %220 = vmatprep.mubr.f32.mxu0 0.0
    %221 = vmatmul.mubr.f32.gmra.mxu0 %v119
    %v222 = vpop.f32.mrf.mxu0
    %v223 = vadd.f32 0.0, %v222
    %v224 = vpop.f32.mrf.mxu0
    %225 = vmatprep.mubr.f32.mxu0 0.0
    %226 = vmatmul.mubr.f32.gmra.mxu0 %v122
    %v227 = vpop.f32.mrf.mxu0
    %v228 = vadd.f32 0.0, %v227
    %v229 = vpop.f32.mrf.mxu0
    %230 = vmatprep.mubr.f32.mxu0 0.0
    %231 = vmatmul.mubr.f32.gmra.mxu0 %v125
    %v232 = vpop.f32.mrf.mxu0
    %v233 = vadd.f32 0.0, %v232
    %v234 = vpop.f32.mrf.mxu0
    %235 = vdwg.mxu0
    %vm236 = vcmask 64512
    %237 = vst.msk [vmem:[#allocation2] sm:$0xff] %vm236, %v198
    %238 = vst.msk [vmem:[#allocation2 + $0x8] sm:$0xff] %vm236, %v203
    %239 = vst.msk [vmem:[#allocation2 + $0x10] sm:$0xff] %vm236, %v208
    %240 = vst.msk [vmem:[#allocation2 + $0x18] sm:$0xff] %vm236, %v213
    %241 = vst.msk [vmem:[#allocation2 + $0x20] sm:$0xff] %vm236, %v218
    %242 = vst.msk [vmem:[#allocation2 + $0x28] sm:$0xff] %vm236, %v223
    %243 = vst.msk [vmem:[#allocation2 + $0x30] sm:$0xff] %vm236, %v228
    %244 = vst.msk [vmem:[#allocation2 + $0x38] sm:$0xff] %vm236, %v233
    // Predicated region
    $region10: #{maxpool2x2.1} parent=1 // pred_check
      _
    $region11: #{maxpool2x2.1} parent=1 // pred_check_branch
      %246 = sbr.rel (0) target = $region13
    $region12: #{maxpool2x2.1} parent=1 // pred_region
      %s248 = ssub.s32 1024, 1024
      %249 = vsyncadd [#allocation3], %s248
      %s250 = sshll.u32 [#allocation2], 4
      %s251 = int_to_ptr.vmem [resolvable:$true] %s250
      %256 = dma.vmem_to_hbm [thread:$0]  %s251, 1024, %s2, [#allocation3], 128, 128, 8
    $region13: #{maxpool2x2.1} parent=1 // pred_fallthru
      _
    // Predicated region
    $region14: #{maxpool2x2.1} parent=1 // pred_check
      _
    $region15: #{maxpool2x2.1} parent=1 // pred_check_branch
      %258 = sbr.rel (0) target = $region17
    $region16: #{maxpool2x2.1} parent=1 // pred_region
      %259 = dma.done [#allocation3], 1024
    $region17: #{maxpool2x2.1} parent=1 // pred_fallthru
      _
    %260 = vsyncpa [#allocation3], 1

</llo_original>
